<compile_context>
chip_gen: v7x
topology: tpu7x:2x2x1
jax: 0.10.0
libtpu: 0.0.40
codegen_flags: <defaults>
</compile_context>

<pallas_src>
import jax
import jax.numpy as jnp
from jax import lax
from jax.experimental import pallas as pl
from jax.experimental.pallas import tpu as pltpu


_MIB = 1024 * 1024


def _round_up(x, m):
    return (x + m - 1) // m * m


def _vmem_budget():
    """Generation-aware scoped-VMEM limit to request."""
    try:
        cap = int(pltpu.get_tpu_info().vmem_capacity_bytes)
    except Exception:  # conservative fallback: assume the smallest (v7x)
        cap = 64 * _MIB
    if cap <= 64 * _MIB:      # v7x: 64 MiB physical VMEM per TC
        return 48 * _MIB
    return 64 * _MIB          # v5e / v6e: 128 MiB physical VMEM


def _pick_tile_n(n, c, itemsize, vmem_limit):
    """Rows per grid step for the single-pass (full-C) kernel.

    Accounts for 2x double-buffered native-dtype logit tiles, ~3 (T,C)
    f32/i32 in-kernel temporaries (f32 cast, class iota, exp/select temp)
    and lane-padded label buffers. Targets ~8 MiB of native logits per step
    but never more than ~60% of the scoped-VMEM limit.
    """
    per_row = c * (2 * itemsize + 3 * 4) + 2 * 512
    budget_rows = int(vmem_limit * 0.6) // max(1, per_row)
    target_rows = (8 * _MIB) // max(1, c * itemsize)
    tile = min(budget_rows, max(8, target_rows))
    tile = max(8, (tile // 8) * 8)
    tile = min(tile, _round_up(n, 8))

    # Keep the tile count even (>= 2) so the "parallel" grid axis
    # load-balances across v7x's two TensorCores.
    num_tiles = pl.cdiv(n, tile)
    if num_tiles >= 2 and num_tiles % 2 == 1:
        tile2 = max(8, _round_up(pl.cdiv(n, num_tiles + 1), 8))
        if pl.cdiv(n, tile2) % 2 == 0:
            tile = tile2
    return int(tile)


def _pick_ctile_params(n, c, itemsize, vmem_limit):
    """(tile_n, tile_c) for the C-tiled online-logsumexp kernel."""
    tile_c = min(_round_up(c, 128), 4096)
    per_row = tile_c * (2 * itemsize + 3 * 4) + 2 * 512 + 3 * 512
    budget_rows = int(vmem_limit * 0.6) // max(1, per_row)
    tile_n = max(8, (budget_rows // 8) * 8)
    tile_n = min(tile_n, 1024)
    tile_n = min(tile_n, _round_up(n, 8))
    return int(tile_n), int(tile_c)


def _partial_block(partial):
    """(8,128) sublane/lane-dense block with the live scalar at [0, 0]."""
    sub = lax.broadcasted_iota(jnp.int32, (8, 128), 0)
    lane = lax.broadcasted_iota(jnp.int32, (8, 128), 1)
    return jnp.where((sub == 0) & (lane == 0), partial, 0.0).astype(jnp.float32)


# --------------------------------------------------------------------------
# Kernel A: single pass over C, row-tiled grid.
# --------------------------------------------------------------------------
def _make_rowtile_kernel(n_total, tile_n, mask_tail):
    def kernel(pred_ref, label_ref, out_ref):
        x = pred_ref[...].astype(jnp.float32)                      # (T, C)
        lbl = label_ref[...]                                       # (T, 1) i32

        # Target-logit pick fused into one row reduction (no one-hot temp).
        cls_idx = lax.broadcasted_iota(jnp.int32, x.shape, 1)      # (T, C)
        picked = jnp.sum(jnp.where(cls_idx == lbl, x, 0.0),
                         axis=-1, keepdims=True)                   # (T, 1)

        # Numerically stable per-row logsumexp.
        row_max = jnp.max(x, axis=-1, keepdims=True)               # (T, 1)
        lse = row_max + jnp.log(
            jnp.sum(jnp.exp(x - row_max), axis=-1, keepdims=True))

        per_row = lse - picked                                     # (T, 1)
        if mask_tail:
            # Only the statically-ragged case pays this cheap (T,1) select;
            # the select also kills NaN/Inf from the padded rows of the
            # final tile.
            row_ids = pl.program_id(0) * tile_n + lax.broadcasted_iota(
                jnp.int32, (tile_n, 1), 0)
            per_row = jnp.where(row_ids < n_total, per_row, 0.0)

        out_ref[...] = _partial_block(jnp.sum(per_row))

    return kernel


def _ce_rowtile(pred, label_2d, n, c, tile_n, vmem_limit):
    itemsize = jnp.dtype(pred.dtype).itemsize
    num_tiles = pl.cdiv(n, tile_n)
    kernel = _make_rowtile_kernel(n, tile_n, (n % tile_n) != 0)

    cost = pl.CostEstimate(
        flops=5 * n * c,
        transcendentals=n * c,
        bytes_accessed=n * c * itemsize + n * 4 + num_tiles * 8 * 128 * 4,
    )

    partials = pl.pallas_call(
        kernel,
        out_shape=jax.ShapeDtypeStruct((num_tiles * 8, 128), jnp.float32),
        grid_spec=pltpu.PrefetchScalarGridSpec(
            num_scalar_prefetch=0,
            grid=(num_tiles,),
            in_specs=[
                pl.BlockSpec((tile_n, c), lambda i: (i, 0)),
                pl.BlockSpec((tile_n, 1), lambda i: (i, 0)),
            ],
            out_specs=pl.BlockSpec((8, 128), lambda i: (i, 0)),
        ),
        compiler_params=pltpu.CompilerParams(
            dimension_semantics=("parallel",),
            vmem_limit_bytes=vmem_limit,
        ),
        cost_estimate=cost,
    )(pred, label_2d)
    return jnp.sum(partials) / jnp.float32(n)


# --------------------------------------------------------------------------
# Kernel B: C-tiled online logsumexp for large class counts (LLM vocab).
# --------------------------------------------------------------------------
def _make_ctile_kernel(n_total, c_total, tile_n, tile_c, mask_rows, mask_cols):
    def kernel(pred_ref, label_ref, out_ref, m_sc, l_sc, p_sc):
        i = pl.program_id(0)
        j = pl.program_id(1)

        @pl.when(j == 0)
        def _():
            m_sc[...] = jnp.full_like(m_sc, -jnp.inf)
            l_sc[...] = jnp.zeros_like(l_sc)
            p_sc[...] = jnp.zeros_like(p_sc)

        x = pred_ref[...].astype(jnp.float32)                      # (T, TC)
        lbl = label_ref[...]                                       # (T, 1)

        col = j * tile_c + lax.broadcasted_iota(jnp.int32, x.shape, 1)
        if mask_cols:
            # Kill the lane padding of the final C tile (C % tile_c != 0).
            x = jnp.where(col < c_total, x, -jnp.inf)

        # Target-logit pick, accumulated across C tiles.
        p_sc[...] += jnp.sum(jnp.where(col == lbl, x, 0.0),
                             axis=-1, keepdims=True)

        # Online (streaming) logsumexp.
        m_new = jnp.maximum(m_sc[...], jnp.max(x, axis=-1, keepdims=True))
        l_sc[...] = (l_sc[...] * jnp.exp(m_sc[...] - m_new)
                     + jnp.sum(jnp.exp(x - m_new), axis=-1, keepdims=True))
        m_sc[...] = m_new

        @pl.when(j == pl.num_programs(1) - 1)
        def _():
            lse = m_sc[...] + jnp.log(l_sc[...])                   # (T, 1)
            per_row = lse - p_sc[...]
            if mask_rows:
                row_ids = i * tile_n + lax.broadcasted_iota(
                    jnp.int32, (tile_n, 1), 0)
                per_row = jnp.where(row_ids < n_total, per_row, 0.0)
            out_ref[...] = _partial_block(jnp.sum(per_row))

    return kernel


def _ce_ctile(pred, label_2d, n, c, tile_n, tile_c, vmem_limit):
    itemsize = jnp.dtype(pred.dtype).itemsize
    num_row_tiles = pl.cdiv(n, tile_n)
    num_c_tiles = pl.cdiv(c, tile_c)
    kernel = _make_ctile_kernel(n, c, tile_n, tile_c,
                                (n % tile_n) != 0, (c % tile_c) != 0)

    cost = pl.CostEstimate(
        flops=8 * n * c,
        transcendentals=n * c,
        bytes_accessed=(n * c * itemsize + n * 4 * num_c_tiles
                        + num_row_tiles * 8 * 128 * 4),
    )

    partials = pl.pallas_call(
        kernel,
        out_shape=jax.ShapeDtypeStruct((num_row_tiles * 8, 128), jnp.float32),
        grid_spec=pltpu.PrefetchScalarGridSpec(
            num_scalar_prefetch=0,
            grid=(num_row_tiles, num_c_tiles),
            in_specs=[
                pl.BlockSpec((tile_n, tile_c), lambda i, j: (i, j)),
                pl.BlockSpec((tile_n, 1), lambda i, j: (i, 0)),
            ],
            out_specs=pl.BlockSpec((8, 128), lambda i, j: (i, 0)),
            scratch_shapes=[
                pltpu.VMEM((tile_n, 1), jnp.float32),   # running max
                pltpu.VMEM((tile_n, 1), jnp.float32),   # running sum(exp)
                pltpu.VMEM((tile_n, 1), jnp.float32),   # running picked logit
            ],
        ),
        compiler_params=pltpu.CompilerParams(
            dimension_semantics=("parallel", "arbitrary"),
            vmem_limit_bytes=vmem_limit,
        ),
        cost_estimate=cost,
    )(pred, label_2d)
    return jnp.sum(partials) / jnp.float32(n)


# --------------------------------------------------------------------------
# Public entry point (mirrors CeLoss.forward).
# --------------------------------------------------------------------------
def ce_loss(pred, label, *, tile_n=None, tile_c=None, large_c_threshold=32768):
    """Mean cross-entropy over integer class labels.

    pred:  (N, C) float logits (kept in native dtype in HBM)
    label: (N,)   int class indices in [0, C)
    returns: scalar float32
    """
    n, c = pred.shape
    itemsize = jnp.dtype(pred.dtype).itemsize
    vmem_limit = _vmem_budget()
    label_2d = label.astype(jnp.int32).reshape(n, 1)

    use_ctile = (tile_c is not None) or (c >= large_c_threshold)
    if use_ctile:
        auto_tn, auto_tc = _pick_ctile_params(n, c, itemsize, vmem_limit)
        tn = int(tile_n) if tile_n is not None else auto_tn
        tc = int(tile_c) if tile_c is not None else auto_tc
        return _ce_ctile(pred, label_2d, n, c, tn, tc, vmem_limit)

    tn = int(tile_n) if tile_n is not None else _pick_tile_n(
        n, c, itemsize, vmem_limit)
    return _ce_rowtile(pred, label_2d, n, c, tn, vmem_limit)


def _ref_ce(pred, label):
    pred32 = pred.astype(jnp.float32)
    lse = jax.nn.logsumexp(pred32, axis=-1)
    picked = jnp.take_along_axis(pred32, label[:, None].astype(jnp.int32),
                                 axis=-1)[:, 0]
    return jnp.mean(lse - picked)


if __name__ == "__main__":
    key = jax.random.PRNGKey(0)
    k1, k2, k3, k4, k5, k6 = jax.random.split(key, 6)

    # Case 1: small, tile-aligned (batch=8, classes=32), f32, single-pass path.
    N1, C1 = 8, 32
    pred1 = jax.random.normal(k1, (N1, C1), dtype=jnp.float32)
    label1 = jax.random.randint(k2, (N1,), 0, C1, dtype=jnp.int32)
    loss1 = ce_loss(pred1, label1)
    jax.block_until_ready(loss1)
    ref1 = _ref_ce(pred1, label1)
    assert jnp.allclose(loss1, ref1, atol=1e-5, rtol=1e-5), (loss1, ref1)

    # Case 2: ragged batch (batch=20, classes=160), bf16 logits streamed in
    # native dtype -> exercises the tail-row masking path.
    N2, C2 = 20, 160
    pred2 = jax.random.normal(k3, (N2, C2), dtype=jnp.float32).astype(jnp.bfloat16)
    label2 = jax.random.randint(k4, (N2,), 0, C2, dtype=jnp.int32)
    loss2 = ce_loss(pred2, label2)
    jax.block_until_ready(loss2)
    ref2 = _ref_ce(pred2, label2)
    assert jnp.allclose(loss2, ref2, atol=2e-2, rtol=2e-2), (loss2, ref2)

    # Case 3: force the C-tiled online-logsumexp (large-vocab) path at a small
    # shape, including a ragged final C tile (160 % 128 != 0).
    N3, C3 = 16, 160
    pred3 = jax.random.normal(k5, (N3, C3), dtype=jnp.float32)
    label3 = jax.random.randint(k6, (N3,), 0, C3, dtype=jnp.int32)
    loss3 = ce_loss(pred3, label3, tile_n=8, tile_c=128)
    jax.block_until_ready(loss3)
    ref3 = _ref_ce(pred3, label3)
    assert jnp.allclose(loss3, ref3, atol=1e-5, rtol=1e-5), (loss3, ref3)

    print("KERNEL_OK")
</pallas_src>

<mosaic_0001>
module attributes {stable_mosaic.version = 11 : i64} {
  func.func @kernel(%arg0: i32, %arg1: memref<8x32xf32, #tpu.memory_space<vmem>>, %arg2: memref<8x1xi32, #tpu.memory_space<vmem>>, %arg3: memref<8x128xf32, #tpu.memory_space<vmem>>) attributes {dimension_semantics = [#tpu.dimension_semantics<parallel>], iteration_bounds = array<i64: 1>, scalar_prefetch = 0 : i64, scratch_operands = 0 : i64, tpu.core_type = #tpu.core_type<tc>, window_params = [{transform_indices = @transform_0, window_bounds = array<i64: 8, 32>}, {transform_indices = @transform_1, window_bounds = array<i64: 8, 1>}, {transform_indices = @transform_2, window_bounds = array<i64: 8, 128>}]} {
    %c0 = arith.constant 0 : index
    %c0_0 = arith.constant 0 : index
    %0 = vector.load %arg1[%c0, %c0_0] : memref<8x32xf32, #tpu.memory_space<vmem>>, vector<8x32xf32>
    %c0_1 = arith.constant 0 : index
    %c0_2 = arith.constant 0 : index
    %1 = vector.load %arg2[%c0_1, %c0_2] : memref<8x1xi32, #tpu.memory_space<vmem>>, vector<8x1xi32>
    %2 = tpu.iota {dimensions = array<i32: 1>} : vector<8x32xi32>
    %3 = vector.broadcast %1 : vector<8x1xi32> to vector<8x32xi32>
    %4 = arith.cmpi eq, %2, %3 : vector<8x32xi32>
    %cst = arith.constant 0.000000e+00 : f32
    %5 = vector.broadcast %cst : f32 to vector<8x32xf32>
    %6 = arith.select %4, %0, %5 : vector<8x32xi1>, vector<8x32xf32>
    %cst_3 = arith.constant dense<0.000000e+00> : vector<8xf32>
    %7 = vector.multi_reduction <add>, %6, %cst_3 [1] : vector<8x32xf32> to vector<8xf32>
    %8 = vector.shape_cast %7 : vector<8xf32> to vector<8x1xf32>
    %cst_4 = arith.constant dense<0xFF800000> : vector<8xf32>
    %9 = vector.multi_reduction <maximumf>, %0, %cst_4 [1] : vector<8x32xf32> to vector<8xf32>
    %10 = vector.shape_cast %9 : vector<8xf32> to vector<8x1xf32>
    %11 = vector.broadcast %10 : vector<8x1xf32> to vector<8x32xf32>
    %12 = arith.subf %0, %11 : vector<8x32xf32>
    %13 = math.exp %12 : vector<8x32xf32>
    %cst_5 = arith.constant dense<0.000000e+00> : vector<8xf32>
    %14 = vector.multi_reduction <add>, %13, %cst_5 [1] : vector<8x32xf32> to vector<8xf32>
    %15 = vector.shape_cast %14 : vector<8xf32> to vector<8x1xf32>
    %16 = math.log %15 : vector<8x1xf32>
    %17 = arith.addf %10, %16 : vector<8x1xf32>
    %18 = arith.subf %17, %8 : vector<8x1xf32>
    %19 = vector.shape_cast %18 : vector<8x1xf32> to vector<1x8x1xf32>
    %cst_6 = arith.constant dense<0.000000e+00> : vector<1xf32>
    %20 = vector.multi_reduction <add>, %19, %cst_6 [1, 2] : vector<1x8x1xf32> to vector<1xf32>
    %21 = vector.shape_cast %20 : vector<1xf32> to vector<1x1x1xf32>
    %22 = vector.extract %21[0, 0, 0] : f32 from vector<1x1x1xf32>
    %23 = tpu.iota {dimensions = array<i32: 0>} : vector<8x128xi32>
    %24 = tpu.iota {dimensions = array<i32: 1>} : vector<8x128xi32>
    %c0_i32 = arith.constant 0 : i32
    %25 = vector.broadcast %c0_i32 : i32 to vector<8x128xi32>
    %26 = arith.cmpi eq, %23, %25 : vector<8x128xi32>
    %c0_i32_7 = arith.constant 0 : i32
    %27 = vector.broadcast %c0_i32_7 : i32 to vector<8x128xi32>
    %28 = arith.cmpi eq, %24, %27 : vector<8x128xi32>
    %29 = arith.andi %26, %28 : vector<8x128xi1>
    %cst_8 = arith.constant 0.000000e+00 : f32
    %30 = vector.broadcast %22 : f32 to vector<8x128xf32>
    %31 = vector.broadcast %cst_8 : f32 to vector<8x128xf32>
    %32 = arith.select %29, %30, %31 : vector<8x128xi1>, vector<8x128xf32>
    %c0_9 = arith.constant 0 : index
    %c0_10 = arith.constant 0 : index
    %33 = vector.load %arg3[%c0_9, %c0_10] : memref<8x128xf32, #tpu.memory_space<vmem>>, vector<8x128xf32>
    tpu.vector_store %arg3[%c0_9, %c0_10], %32 {strides = array<i32>} : memref<8x128xf32, #tpu.memory_space<vmem>>, vector<8x128xf32>,
    return
  }
  func.func @transform_0(%arg0: i32) -> (i32, i32) {
    %c0_i32 = arith.constant 0 : i32
    %c0_i32_0 = arith.constant 0 : i32
    return %arg0, %c0_i32 : i32, i32
  }
  func.func @transform_1(%arg0: i32) -> (i32, i32) {
    %c0_i32 = arith.constant 0 : i32
    %c0_i32_0 = arith.constant 0 : i32
    return %arg0, %c0_i32 : i32, i32
  }
  func.func @transform_2(%arg0: i32) -> (i32, i32) {
    %c0_i32 = arith.constant 0 : i32
    %c0_i32_0 = arith.constant 0 : i32
    return %arg0, %c0_i32 : i32, i32
  }
}

</mosaic_0001>

<llo_original>
// kernel: tpu_custom_call.1
$region0: #{tpu_custom_call.1}
  #allocation0 [shape = 'u32[]', space=smem, size = 0x4, offset = 0x4, fixed_abs, tag = 'smem constant byte address 0x4 - core index']
  #allocation1 [shape = 'u32[144,128]{1,0:T(1,128)}', space=vmem, size = 0x12000, scoped, tag = 'internal scratch']
  %s0 = inlined_call_operand.vmem [shape: f32[8,32], index: 0, kind: input, shape index: {}]
  %s1 = inlined_call_operand.vmem [shape: s32[8,1], index: 1, kind: input, shape index: {}]
  %s2 = inlined_call_operand.hbm [shape: f32[8,128], index: 2, kind: output, shape index: {}]
  %s3 = sld [smem:[#allocation0]]
  $region18: #{tpu_custom_call.1} parent=0
    _
  %s5 = ssub.s32 1, %s3
  %s6 = scalar_select 0, %s5, %s3
  $region1: #{tpu_custom_call.1} parent=0
    #allocation2 [shape = 'u8[4096]{0}', space=vmem, size = 0x1000, scoped, tag = 'output window, operand 0, single buffered']
    #allocation3 [shape = 's32[1]{0}', space=sflag, size = 0x4, scoped, tag = 'scoped memory for tpu_custom_call.1']
    %7 = vsyncpa [#allocation3], 0
    // Predicated region
    $region2: #{tpu_custom_call.1} parent=1 // pred_check
      _
    $region3: #{tpu_custom_call.1} parent=1 // pred_check_branch
      %9 = sbr.rel (0) target = $region5
    $region4: #{tpu_custom_call.1} parent=1 // pred_region
      _
    $region5: #{tpu_custom_call.1} parent=1 // pred_fallthru
      _
    // Predicated region
    $region6: #{tpu_custom_call.1} parent=1 // pred_check
      _
    $region7: #{tpu_custom_call.1} parent=1 // pred_check_branch
      %11 = sbr.rel (0) target = $region9
    $region8: #{tpu_custom_call.1} parent=1 // pred_region
      _
    $region9: #{tpu_custom_call.1} parent=1 // pred_fallthru
      _
    %v12 = vld [vmem:[%s0] sm:$0xff]
    %v13 = vld [vmem:[%s1] sm:$0xff]
    %v14 = vlaneseq
    %v15 = vand.u32 %v14, 127
    %16 = vset.pattern.permute.xlu0 0
    %17 = vperm.xlu0 %16, %v13
    %v18 = vpop.permute.xlu0 %17
    %vm19 = vcmp.eq.s32.totalorder %v15, %v18
    %v20 = vsel %vm19, %v12, 0.0
    %vm21 = vcmask 261120
    %v22 = vsel %vm21, %v20, 0.0
    %23 = vadd.xlane.f32.xlu0 %v22
    %v24 = vpop.xlane.xlu0 %23
    %v25 = vsel %vm21, %v12, -inf
    %26 = vmax.xlane.f32.xlu0 %v25
    %v27 = vpop.xlane.xlu0 %26
    %v28 = vsub.f32 %v12, %v27
    %v29 = vmul.f32 %v28, 1.442695
    %v30 = vpow.pop %v29
    %v31 = vsel %vm21, %v30, 0.0
    %32 = vadd.xlane.f32.xlu0 %v31
    %v33 = vpop.xlane.xlu0 %32
    %v34 = vlog2.pop %v33
    %v35 = vmul.f32 %v34, 0.6931472
    %v36 = vadd.f32 %v27, %v35
    %v37 = vsub.f32 %v36, %v24
    %vm38 = vcmask 7168
    %v39 = vsel %vm38, %v37, 0.0
    %40 = vadd.xlane.f32.xlu0 %v39
    %v41 = vpop.xlane.xlu0 %40
    %v42 = vrot.slane %v41, 4
    %v43 = vadd.f32 %v41, %v42
    %v44 = vrot.slane %v43, 2
    %v45 = vadd.f32 %v43, %v44
    %v46 = vrot.slane %v45, 1
    %v47 = vadd.f32 %v45, %v46
    %s48 = vtos %v47
    %v49 = vlaneseq
    %v50 = vshrl.u32 %v49, 7
    %vm51 = vcmp.eq.s32.totalorder %v50, 0
    %vm52 = vcmp.eq.s32.totalorder %v15, 0
    %vm53 = vmand %vm51, %vm52
    %v54 = vstv %s48
    %v55 = vsel %vm53, %v54, 0.0
    %56 = vst [vmem:[#allocation2] sm:$0xff] %v55
    // Predicated region
    $region10: #{tpu_custom_call.1} parent=1 // pred_check
      _
    $region11: #{tpu_custom_call.1} parent=1 // pred_check_branch
      %58 = sbr.rel (0) target = $region13
    $region12: #{tpu_custom_call.1} parent=1 // pred_region
      %s60 = ssub.s32 128, 128
      %61 = vsyncadd [#allocation3], %s60
      %s63 = sshll.u32 [#allocation2], 4
      %s64 = int_to_ptr.vmem [resolvable:$true] %s63
      %66 = dma.vmem_to_hbm [thread:$0]  %s64, 128, %s2, [#allocation3]
    $region13: #{tpu_custom_call.1} parent=1 // pred_fallthru
      _
    // Predicated region
    $region14: #{tpu_custom_call.1} parent=1 // pred_check
      _
    $region15: #{tpu_custom_call.1} parent=1 // pred_check_branch
      %68 = sbr.rel (0) target = $region17
    $region16: #{tpu_custom_call.1} parent=1 // pred_region
      %69 = dma.done [#allocation3], 128
    $region17: #{tpu_custom_call.1} parent=1 // pred_fallthru
      _
    %70 = vsyncpa [#allocation3], 1

</llo_original>
